<compile_context>
chip_gen: v6e
topology: v6e:2x2x1
jax: 0.10.0
libtpu: 0.0.40
codegen_flags: <defaults>
</compile_context>

<pallas_src>
import jax
import jax.numpy as jnp
import numpy as np
from jax.experimental import pallas as pl
from jax.experimental.pallas import tpu as pltpu


def _round_up(a, b):
    return (a + b - 1) // b * b


def deletion_kernel(tile_any_ref, x_ref, w_ref, m_ref, o_ref):
    """Process one (tm, Dp) row tile.

    tile_any_ref: SMEM (num_tiles,) int32 -- nonzero iff this tile contains
                  any masked (deleted) row.
    x_ref:        VMEM (tm, Dp) node-feature tile
    w_ref:        VMEM (Dp, Dp) deletion weight (resident, single-buffered)
    m_ref:        VMEM (tm, 1) int32 row-mask tile
    o_ref:        VMEM (tm, Dp) output tile
    """
    i = pl.program_id(0)
    has_deleted = tile_any_ref[i] != 0

    @pl.when(has_deleted)
    def _():
        x = x_ref[...]
        # MXU matmul of the whole row tile against the deletion weight.
        y = jnp.dot(x, w_ref[...], preferred_element_type=jnp.float32)
        sel = m_ref[...] != 0                  # (tm, 1) bool, broadcasts over lanes
        o_ref[...] = jnp.where(sel, y.astype(x.dtype), x)

    @pl.when(jnp.logical_not(has_deleted))
    def _():
        # No deleted rows in this tile: pure pass-through, no MXU work.
        o_ref[...] = x_ref[...]


def _choose_tm(d_pad, itemsize, vmem_budget=24 * 1024 * 1024):
    """Largest row tile whose working set fits a conservative VMEM budget
    (safe on v5e/v6e/v7x with the explicit 48 MiB scoped limit below)."""
    w_bytes = d_pad * d_pad * 4                # weight, single-buffered
    for cand in (2048, 1024, 512, 256, 128, 64, 32, 16, 8):
        tile_bytes = cand * d_pad * itemsize
        need = 2 * tile_bytes                  # x tile, double-buffered
        need += 2 * tile_bytes                 # out tile, double-buffered
        need += w_bytes                        # resident weight
        need += 2 * cand * 4                   # int32 mask side-channel
        if need <= vmem_budget:
            return cand
    return 8


def deletion_layer(x, deletion_weight, mask, *, tm=None):
    """Apply the DeletionLayer forward pass.

    x:               [N, D] float
    deletion_weight: [D, D] float
    mask:            [N]    bool  (or None -> identity, as in the module)
    """
    if mask is None:
        return x

    N, D = x.shape
    dtype = x.dtype
    itemsize = jnp.dtype(dtype).itemsize

    # Lane-dense feature dim (multiple of 128) -> unmasked vst, full MXU width.
    Dp = _round_up(D, 128)
    if tm is None:
        tm = _choose_tm(Dp, itemsize)
    # Clamp the row tile to the (8-aligned) problem size; keep it a multiple of 8.
    tm = max(8, _round_up(min(tm, _round_up(N, 8)), 8))
    Np = _round_up(N, tm)
    num_tiles = Np // tm

    xp = x if (Np == N and Dp == D) else jnp.pad(x, ((0, Np - N), (0, Dp - D)))
    wp = deletion_weight if Dp == D else jnp.pad(
        deletion_weight, ((0, Dp - D), (0, Dp - D)))

    mask_i32 = jnp.pad(mask.astype(jnp.int32), (0, Np - N))
    # Per-tile "any masked row" flag, scalar-prefetched into SMEM.
    tile_any = mask_i32.reshape(num_tiles, tm).max(axis=1).astype(jnp.int32)
    mask_i32 = mask_i32.reshape(Np, 1)

    cost = pl.CostEstimate(
        flops=2 * Np * Dp * Dp,
        transcendentals=0,
        bytes_accessed=2 * Np * Dp * itemsize + Dp * Dp * itemsize + Np * 4,
    )

    out = pl.pallas_call(
        deletion_kernel,
        out_shape=jax.ShapeDtypeStruct((Np, Dp), dtype),
        grid_spec=pltpu.PrefetchScalarGridSpec(
            num_scalar_prefetch=1,                 # tile_any -> SMEM
            grid=(num_tiles,),
            in_specs=[
                pl.BlockSpec((tm, Dp), lambda i, t: (i, 0)),    # x row tile
                pl.BlockSpec((Dp, Dp), lambda i, t: (0, 0),     # resident weight,
                             pipeline_mode=pl.Buffered(1)),     #  single-buffered
                pl.BlockSpec((tm, 1), lambda i, t: (i, 0)),     # mask row tile
            ],
            out_specs=pl.BlockSpec((tm, Dp), lambda i, t: (i, 0)),
        ),
        compiler_params=pltpu.CompilerParams(
            dimension_semantics=("parallel",),     # row tiles shard across TCs on v7x
            vmem_limit_bytes=48 * 1024 * 1024,     # fits v7x's 64 MiB physical VMEM
        ),
        cost_estimate=cost,
    )(tile_any, xp, wp, mask_i32)

    if Np != N or Dp != D:
        out = out[:N, :D]
    return out


if __name__ == "__main__":
    key = jax.random.PRNGKey(0)
    k_x, k_m, k_x2 = jax.random.split(key, 3)

    # Small shapes consistent with the module: N nodes, hidden dim = 32.
    N, dim = 16, 32

    # Deterministic parameter init, exactly as the module: ones(dim, dim)/1000
    deletion_weight = jnp.ones((dim, dim), dtype=jnp.float32) / 1000.0

    x = jax.random.normal(k_x, (N, dim), dtype=jnp.float32)
    mask = jax.random.bernoulli(k_m, p=0.5, shape=(N,))

    out = jax.block_until_ready(deletion_layer(x, deletion_weight, mask))
    ref = jnp.where(mask[:, None], x @ deletion_weight, x)
    np.testing.assert_allclose(np.asarray(out), np.asarray(ref),
                               rtol=1e-5, atol=1e-5)

    # Non-8-aligned row count + all-unmasked mask: exercises the padded tail
    # tile and the pass-through (MXU-skip) branch.
    N2 = 13
    x2 = jax.random.normal(k_x2, (N2, dim), dtype=jnp.float32)
    mask2 = jnp.zeros((N2,), dtype=bool)
    out2 = jax.block_until_ready(deletion_layer(x2, deletion_weight, mask2))
    np.testing.assert_allclose(np.asarray(out2), np.asarray(x2),
                               rtol=1e-6, atol=1e-6)

    # mask=None path (identity), as in the PyTorch module.
    out3 = jax.block_until_ready(deletion_layer(x, deletion_weight, None))
    np.testing.assert_allclose(np.asarray(out3), np.asarray(x))

    print("KERNEL_OK")
</pallas_src>

<mosaic_0001>
module attributes {stable_mosaic.version = 11 : i64} {
  func.func @deletion_kernel(%arg0: i32, %arg1: memref<1xi32, #tpu.memory_space<smem>>, %arg2: memref<16x128xf32, #tpu.memory_space<vmem>>, %arg3: memref<128x128xf32, #tpu.memory_space<vmem>>, %arg4: memref<16x1xi32, #tpu.memory_space<vmem>>, %arg5: memref<16x128xf32, #tpu.memory_space<vmem>>) attributes {dimension_semantics = [#tpu.dimension_semantics<parallel>], iteration_bounds = array<i64: 1>, scalar_prefetch = 1 : i64, scratch_operands = 0 : i64, tpu.core_type = #tpu.core_type<tc>, window_params = [{transform_indices = @transform_0, window_bounds = array<i64: 16, 128>}, {pipeline_mode = #tpu.pipeline_mode<synchronous>, transform_indices = @transform_1, window_bounds = array<i64: 128, 128>}, {transform_indices = @transform_2, window_bounds = array<i64: 16, 1>}, {transform_indices = @transform_3, window_bounds = array<i64: 16, 128>}]} {
    %0 = arith.index_cast %arg0 : i32 to index
    %1 = memref.load %arg1[%0] : memref<1xi32, #tpu.memory_space<smem>>
    %c0_i32 = arith.constant 0 : i32
    %2 = arith.cmpi ne, %1, %c0_i32 : i32
    %3 = arith.extui %2 : i1 to i32
    %c0_i32_0 = arith.constant 0 : i32
    %4 = arith.cmpi ne, %3, %c0_i32_0 : i32
    scf.if %4 {
      %c0 = arith.constant 0 : index
      %c0_2 = arith.constant 0 : index
      %8 = vector.load %arg2[%c0, %c0_2] : memref<16x128xf32, #tpu.memory_space<vmem>>, vector<16x128xf32>
      %c0_3 = arith.constant 0 : index
      %c0_4 = arith.constant 0 : index
      %9 = vector.load %arg3[%c0_3, %c0_4] : memref<128x128xf32, #tpu.memory_space<vmem>>, vector<128x128xf32>
      %cst = arith.constant dense<0.000000e+00> : vector<16x128xf32>
      %10 = tpu.matmul %8, %9, %cst {dimension_numbers = #tpu.dot_dimension_numbers<[1], [0], [0], [1], [0, 0, 1, 1], [], []>} : vector<16x128xf32>, vector<128x128xf32>, vector<16x128xf32> -> vector<16x128xf32>
      %c0_5 = arith.constant 0 : index
      %c0_6 = arith.constant 0 : index
      %11 = vector.load %arg4[%c0_5, %c0_6] : memref<16x1xi32, #tpu.memory_space<vmem>>, vector<16x1xi32>
      %c0_i32_7 = arith.constant 0 : i32
      %12 = vector.broadcast %c0_i32_7 : i32 to vector<16x1xi32>
      %13 = arith.cmpi ne, %11, %12 : vector<16x1xi32>
      %14 = vector.shape_cast %13 : vector<16x1xi1> to vector<16x1xi1>
      %15 = vector.broadcast %14 : vector<16x1xi1> to vector<16x128xi1>
      %16 = arith.select %15, %10, %8 : vector<16x128xi1>, vector<16x128xf32>
      %c0_8 = arith.constant 0 : index
      %c0_9 = arith.constant 0 : index
      %17 = vector.load %arg5[%c0_8, %c0_9] : memref<16x128xf32, #tpu.memory_space<vmem>>, vector<16x128xf32>
      tpu.vector_store %arg5[%c0_8, %c0_9], %16 {strides = array<i32>} : memref<16x128xf32, #tpu.memory_space<vmem>>, vector<16x128xf32>,
    } else {
    }
    %true = arith.constant true
    %5 = arith.xori %2, %true : i1
    %6 = arith.extui %5 : i1 to i32
    %c0_i32_1 = arith.constant 0 : i32
    %7 = arith.cmpi ne, %6, %c0_i32_1 : i32
    scf.if %7 {
      %c0 = arith.constant 0 : index
      %c0_2 = arith.constant 0 : index
      %8 = vector.load %arg2[%c0, %c0_2] : memref<16x128xf32, #tpu.memory_space<vmem>>, vector<16x128xf32>
      %c0_3 = arith.constant 0 : index
      %c0_4 = arith.constant 0 : index
      %9 = vector.load %arg5[%c0_3, %c0_4] : memref<16x128xf32, #tpu.memory_space<vmem>>, vector<16x128xf32>
      tpu.vector_store %arg5[%c0_3, %c0_4], %8 {strides = array<i32>} : memref<16x128xf32, #tpu.memory_space<vmem>>, vector<16x128xf32>,
    } else {
    }
    return
  }
  func.func @transform_0(%arg0: i32, %arg1: memref<1xi32, #tpu.memory_space<smem>>) -> (i32, i32) {
    %c0_i32 = arith.constant 0 : i32
    %c0_i32_0 = arith.constant 0 : i32
    return %arg0, %c0_i32 : i32, i32
  }
  func.func @transform_1(%arg0: i32, %arg1: memref<1xi32, #tpu.memory_space<smem>>) -> (i32, i32) {
    %c0_i32 = arith.constant 0 : i32
    %c0_i32_0 = arith.constant 0 : i32
    %c0_i32_1 = arith.constant 0 : i32
    return %c0_i32, %c0_i32_0 : i32, i32
  }
  func.func @transform_2(%arg0: i32, %arg1: memref<1xi32, #tpu.memory_space<smem>>) -> (i32, i32) {
    %c0_i32 = arith.constant 0 : i32
    %c0_i32_0 = arith.constant 0 : i32
    return %arg0, %c0_i32 : i32, i32
  }
  func.func @transform_3(%arg0: i32, %arg1: memref<1xi32, #tpu.memory_space<smem>>) -> (i32, i32) {
    %c0_i32 = arith.constant 0 : i32
    %c0_i32_0 = arith.constant 0 : i32
    return %arg0, %c0_i32 : i32, i32
  }
}

</mosaic_0001>

<llo_original>
// kernel: tpu_custom_call.1
$region0: #{tpu_custom_call.1}
  #allocation0 [shape = 'u32[]', space=smem, size = 0x4, offset = 0x4, fixed_abs, tag = 'smem constant byte address 0x4 - core index']
  #allocation1 [shape = 'u32[144,128]{1,0:T(1,128)}', space=vmem, size = 0x12000, scoped, tag = 'internal scratch']
  #allocation2 [shape = 's32[1]{0}', space=sflag, size = 0x4, scoped, tag = 'scoped memory for tpu_custom_call.1']
  #allocation3 [shape = 's32[1]{0:T(128)S(6)}', space=smem, size = 0x200, scoped, tag = 'prefetched SMEM operand 0']
  %s0 = inlined_call_operand.<no memory space> [shape: s32[1], index: 0, kind: input, shape index: {}]
  %s1 = inlined_call_operand.vmem [shape: f32[16,128], index: 1, kind: input, shape index: {}]
  %s2 = inlined_call_operand.hbm [shape: f32[128,128], index: 2, kind: input, shape index: {}]
  %s3 = inlined_call_operand.vmem [shape: s32[16,1], index: 3, kind: input, shape index: {}]
  %s4 = inlined_call_operand.hbm [shape: f32[16,128], index: 4, kind: output, shape index: {}]
  %s5 = sld [smem:[#allocation0]]
  $region34: #{tpu_custom_call.1} parent=0
    _
  %s7 = ssub.s32 1, %s5
  %s8 = scalar_select 0, %s7, %s5
  %9 = sst [smem:[#allocation3]] %s0
  $region1: #{tpu_custom_call.1} parent=0
    #allocation4 [shape = 'u8[65536]{0}', space=vmem, size = 0x10000, scoped, tag = 'input window, operand 2, single buffered']
    #allocation5 [shape = 's32[1]{0}', space=sflag, size = 0x4, scoped, tag = 'scoped memory for tpu_custom_call.1']
    #allocation6 [shape = 's32[1]{0}', space=sflag, size = 0x4, scoped, tag = 'scoped memory for tpu_custom_call.1']
    #allocation7 [shape = 'u8[8192]{0}', space=vmem, size = 0x2000, scoped, tag = 'output window, operand 0, single buffered']
    %10 = vsyncpa [#allocation5], 0
    %11 = vsyncpa [#allocation6], 0
    // Predicated region
    $region2: #{tpu_custom_call.1} parent=1 // pred_check
      _
    $region3: #{tpu_custom_call.1} parent=1 // pred_check_branch
      %13 = sbr.rel (0) target = $region5
    $region4: #{tpu_custom_call.1} parent=1 // pred_region
      _
    $region5: #{tpu_custom_call.1} parent=1 // pred_fallthru
      _
    // Predicated region
    $region6: #{tpu_custom_call.1} parent=1 // pred_check
      _
    $region7: #{tpu_custom_call.1} parent=1 // pred_check_branch
      %15 = sbr.rel (0) target = $region9
    $region8: #{tpu_custom_call.1} parent=1 // pred_region
      %s17 = ssub.s32 2048, 2048
      %18 = vsyncadd [#allocation5], %s17
      %s19 = sshll.u32 [#allocation4], 4
      %s20 = int_to_ptr.vmem [resolvable:$true] %s19
      %25 = dma.hbm_to_vmem [thread:$0]  %s2, 2048, %s20, [#allocation5], 128, 128, 8
    $region9: #{tpu_custom_call.1} parent=1 // pred_fallthru
      _
    // Predicated region
    $region10: #{tpu_custom_call.1} parent=1 // pred_check
      _
    $region11: #{tpu_custom_call.1} parent=1 // pred_check_branch
      %27 = sbr.rel (0) target = $region13
    $region12: #{tpu_custom_call.1} parent=1 // pred_region
      _
    $region13: #{tpu_custom_call.1} parent=1 // pred_fallthru
      _
    // Predicated region
    $region14: #{tpu_custom_call.1} parent=1 // pred_check
      _
    $region15: #{tpu_custom_call.1} parent=1 // pred_check_branch
      %29 = sbr.rel (0) target = $region17
    $region16: #{tpu_custom_call.1} parent=1 // pred_region
      %30 = dma.done [#allocation5], 2048
    $region17: #{tpu_custom_call.1} parent=1 // pred_fallthru
      _
    %s31 = sld [smem:[#allocation3]]
    %p32 = scmp.ne.s32.totalorder %s31, 0
    // Predicated region
    $region18: #{tpu_custom_call.1} parent=1 // pred_check
      %p33 = pneg %p32
    $region19: #{tpu_custom_call.1} parent=1 // pred_check_branch
      %35 = sbr.rel (%p33) target = $region21
    $region20: #{tpu_custom_call.1} parent=1 // pred_region
      %v36 = vld [vmem:[%s1] sm:$0xff]
      %v37 = vld [vmem:[%s1 + $0x8] sm:$0xff]
      %v38 = vld [vmem:[#allocation4] sm:$0xff]
      %v39 = vld [vmem:[#allocation4 + $0x8] sm:$0xff]
      %v40 = vld [vmem:[#allocation4 + $0x10] sm:$0xff]
      %v41 = vld [vmem:[#allocation4 + $0x18] sm:$0xff]
      %v42 = vld [vmem:[#allocation4 + $0x20] sm:$0xff]
      %v43 = vld [vmem:[#allocation4 + $0x28] sm:$0xff]
      %v44 = vld [vmem:[#allocation4 + $0x30] sm:$0xff]
      %v45 = vld [vmem:[#allocation4 + $0x38] sm:$0xff]
      %v46 = vld [vmem:[#allocation4 + $0x40] sm:$0xff]
      %v47 = vld [vmem:[#allocation4 + $0x48] sm:$0xff]
      %v48 = vld [vmem:[#allocation4 + $0x50] sm:$0xff]
      %v49 = vld [vmem:[#allocation4 + $0x58] sm:$0xff]
      %v50 = vld [vmem:[#allocation4 + $0x60] sm:$0xff]
      %v51 = vld [vmem:[#allocation4 + $0x68] sm:$0xff]
      %v52 = vld [vmem:[#allocation4 + $0x70] sm:$0xff]
      %v53 = vld [vmem:[#allocation4 + $0x78] sm:$0xff]
      %54 = vmatprep.subr.mxu0 0.0
      %55 = vmatpush1.msra.mxu0 %v53
      %56 = vmatprep.subr.mxu0 0.0
      %57 = vmatpush1.msra.mxu0 %v52
      %58 = vmatprep.subr.mxu0 0.0
      %59 = vmatpush1.msra.mxu0 %v51
      %60 = vmatprep.subr.mxu0 0.0
      %61 = vmatpush1.msra.mxu0 %v50
      %62 = vmatprep.subr.mxu0 0.0
      %63 = vmatpush1.msra.mxu0 %v49
      %64 = vmatprep.subr.mxu0 0.0
      %65 = vmatpush1.msra.mxu0 %v48
      %66 = vmatprep.subr.mxu0 0.0
      %67 = vmatpush1.msra.mxu0 %v47
      %68 = vmatprep.subr.mxu0 0.0
      %69 = vmatpush1.msra.mxu0 %v46
      %70 = vmatprep.subr.mxu0 0.0
      %71 = vmatpush1.msra.mxu0 %v45
      %72 = vmatprep.subr.mxu0 0.0
      %73 = vmatpush1.msra.mxu0 %v44
      %74 = vmatprep.subr.mxu0 0.0
      %75 = vmatpush1.msra.mxu0 %v43
      %76 = vmatprep.subr.mxu0 0.0
      %77 = vmatpush1.msra.mxu0 %v42
      %78 = vmatprep.subr.mxu0 0.0
      %79 = vmatpush1.msra.mxu0 %v41
      %80 = vmatprep.subr.mxu0 0.0
      %81 = vmatpush1.msra.mxu0 %v40
      %82 = vmatprep.subr.mxu0 0.0
      %83 = vmatpush1.msra.mxu0 %v39
      %84 = vmatprep.subr.mxu0 0.0
      %85 = vmatpush1.msra.mxu0 %v38
      %86 = vmatprep.subr.mxu0 0.0
      %87 = vmatpush2.msra.mxu0 0.0
      %88 = vmatprep.subr.mxu0 0.0
      %89 = vmatpush2.msra.mxu0 0.0
      %90 = vmatprep.subr.mxu0 0.0
      %91 = vmatpush2.msra.mxu0 0.0
      %92 = vmatprep.subr.mxu0 0.0
      %93 = vmatpush2.msra.mxu0 0.0
      %94 = vmatprep.subr.mxu0 0.0
      %95 = vmatpush2.msra.mxu0 0.0
      %96 = vmatprep.subr.mxu0 0.0
      %97 = vmatpush2.msra.mxu0 0.0
      %98 = vmatprep.subr.mxu0 0.0
      %99 = vmatpush2.msra.mxu0 0.0
      %100 = vmatprep.subr.mxu0 0.0
      %101 = vmatpush2.msra.mxu0 0.0
      %102 = vmatprep.subr.mxu0 0.0
      %103 = vmatpush2.msra.mxu0 0.0
      %104 = vmatprep.subr.mxu0 0.0
      %105 = vmatpush2.msra.mxu0 0.0
      %106 = vmatprep.subr.mxu0 0.0
      %107 = vmatpush2.msra.mxu0 0.0
      %108 = vmatprep.subr.mxu0 0.0
      %109 = vmatpush2.msra.mxu0 0.0
      %110 = vmatprep.subr.mxu0 0.0
      %111 = vmatpush2.msra.mxu0 0.0
      %112 = vmatprep.subr.mxu0 0.0
      %113 = vmatpush2.msra.mxu0 0.0
      %114 = vmatprep.subr.mxu0 0.0
      %115 = vmatpush2.msra.mxu0 0.0
      %116 = vmatprep.subr.mxu0 0.0
      %117 = vmatpush2.msra.mxu0 0.0
      %118 = vmatprep.mubr.f32.mxu0 0.0
      %119 = vmatmul.mubr.f32.gmra.mxu0 %v36
      %v120 = vpop.f32.mrf.mxu0
      %v121 = vadd.f32 0.0, %v120
      %v122 = vpop.f32.mrf.mxu0
      %123 = vmatprep.mubr.f32.mxu0 0.0
      %124 = vmatmul.mubr.f32.gmra.mxu0 %v37
      %v125 = vpop.f32.mrf.mxu0
      %v126 = vadd.f32 0.0, %v125
      %v127 = vpop.f32.mrf.mxu0
      %128 = vdwg.mxu0
      %v129 = vld [vmem:[%s3] sm:$0xff]
      %v130 = vld [vmem:[%s3 + $0x8] sm:$0xff]
      %vm131 = vcmp.ne.s32.totalorder %v129, 0
      %vm132 = vcmp.ne.s32.totalorder %v130, 0
      %v133 = vsel %vm131, 1, 0
      %v134 = vsel %vm132, 1, 0
      %135 = vset.pattern.permute.xlu0 0
      %136 = vperm.xlu0 %135, %v133
      %v137 = vpop.permute.xlu0 %136
      %138 = vset.pattern.permute.xlu0 0
      %139 = vperm.xlu0 %138, %v134
      %v140 = vpop.permute.xlu0 %139
      %vm141 = vcmp.eq.s32.totalorder %v137, 1
      %vm142 = vcmp.eq.s32.totalorder %v140, 1
      %v143 = vsel %vm141, %v121, %v36
      %v144 = vsel %vm142, %v126, %v37
      %145 = vst [vmem:[#allocation7] sm:$0xff] %v143
      %146 = vst [vmem:[#allocation7 + $0x8] sm:$0xff] %v144
    $region21: #{tpu_custom_call.1} parent=1 // pred_fallthru
      _
    %p147 = scmp.eq.s32.totalorder %s31, 0
    // Predicated region
    $region22: #{tpu_custom_call.1} parent=1 // pred_check
      %p148 = pneg %p147
    $region23: #{tpu_custom_call.1} parent=1 // pred_check_branch
      %150 = sbr.rel (%p148) target = $region25
    $region24: #{tpu_custom_call.1} parent=1 // pred_region
      %v151 = vld [vmem:[%s1] sm:$0xff]
      %v152 = vld [vmem:[%s1 + $0x8] sm:$0xff]
      %153 = vst [vmem:[#allocation7] sm:$0xff] %v151
      %154 = vst [vmem:[#allocation7 + $0x8] sm:$0xff] %v152
    $region25: #{tpu_custom_call.1} parent=1 // pred_fallthru
      _
    // Predicated region
    $region26: #{tpu_custom_call.1} parent=1 // pred_check
      _
    $region27: #{tpu_custom_call.1} parent=1 // pred_check_branch
      %156 = sbr.rel (0) target = $region29
    $region28: #{tpu_custom_call.1} parent=1 // pred_region
      %s158 = ssub.s32 256, 256
      %159 = vsyncadd [#allocation6], %s158
      %s160 = sshll.u32 [#allocation7], 4
      %s161 = int_to_ptr.vmem [resolvable:$true] %s160
      %166 = dma.vmem_to_hbm [thread:$0]  %s161, 256, %s4, [#allocation6], 128, 128, 8
    $region29: #{tpu_custom_call.1} parent=1 // pred_fallthru
      _
    // Predicated region
    $region30: #{tpu_custom_call.1} parent=1 // pred_check
      _
    $region31: #{tpu_custom_call.1} parent=1 // pred_check_branch
      %168 = sbr.rel (0) target = $region33
    $region32: #{tpu_custom_call.1} parent=1 // pred_region
      %169 = dma.done [#allocation6], 256
    $region33: #{tpu_custom_call.1} parent=1 // pred_fallthru
      _
    %170 = vsyncpa [#allocation5], 1
    %171 = vsyncpa [#allocation6], 1

</llo_original>
